<compile_context>
chip_gen: v7x
topology: tpu7x:2x2x1
jax: 0.10.0
libtpu: 0.0.40
codegen_flags: <defaults>
</compile_context>

<pallas_src>
import functools

import jax
import jax.numpy as jnp
from jax import lax
from jax.experimental import pallas as pl
from jax.experimental.pallas import tpu as pltpu

LANE = 128
MAX_TILE_ROWS = 8192            # 4 MiB per f32 input buffer; 2 inputs x 2
                                # pipeline buffers = 16 MiB, well inside the
                                # explicit 32 MiB scoped-VMEM limit below.
VMEM_LIMIT_BYTES = 32 * 1024 * 1024


def _round_up(x, m):
    return (x + m - 1) // m * m


@functools.lru_cache(maxsize=None)
def _detect_num_tensorcores():
    """TensorCores a single pallas_call's leading 'parallel' axis can shard
    across (v7x megacore = 2; v5e/v6e = 1).  Falls back to 1 so single-core
    chips never pay multi-core grid overhead."""
    try:
        info = pltpu.get_tpu_info()
        for name in ("num_cores", "num_tensorcores", "tensorcore_count",
                     "cores_per_chip"):
            v = getattr(info, name, None)
            if isinstance(v, int) and v >= 1:
                return max(1, min(2, v))
    except Exception:
        pass
    return 1


def _dice_kernel(pred_ref, true_ref, pt_out_ref, ppt_out_ref,
                 acc_pt_ref, acc_ppt_ref, *,
                 threshold, valid_rows, tile_rows, tiles_per_core):
    c = pl.program_id(0)          # core slice (parallel axis)
    i = pl.program_id(1)          # tile within the core slice (arbitrary axis)

    @pl.when(i == 0)
    def _init():
        acc_pt_ref[...] = jnp.zeros_like(acc_pt_ref)
        acc_ppt_ref[...] = jnp.zeros_like(acc_ppt_ref)

    # Threshold compares once, as bools; accumulate in f32.
    pc = pred_ref[...] > threshold
    tc = true_ref[...] > threshold
    p = pc.astype(jnp.float32)
    t = tc.astype(jnp.float32)
    pt = jnp.where(pc & tc, 1.0, 0.0).astype(jnp.float32)   # == p * t, no fmul
    ppt = p + t                                             # == p + t (l + r)

    g = tile_rows // 8            # (tile_rows,128) -> (g,8,128) is a free
                                  # relabeling of native (8,128) VMEM tiles.

    tile_idx = c * tiles_per_core + i          # unclamped logical tile index
    row_start = tile_idx * tile_rows

    @pl.when(row_start + tile_rows <= valid_rows)
    def _full_tile():                          # hot path: no mask work
        acc_pt_ref[...] += jnp.sum(pt.reshape(g, 8, LANE), axis=0)
        acc_ppt_ref[...] += jnp.sum(ppt.reshape(g, 8, LANE), axis=0)

    @pl.when(row_start + tile_rows > valid_rows)
    def _ragged_tile():                        # last / overshoot tiles only
        # Row-level validity: cheap, and no int32 flat-index overflow.
        row_iota = lax.broadcasted_iota(jnp.int32, (tile_rows, LANE), 0)
        valid = (row_start + row_iota) < valid_rows
        pt_m = jnp.where(valid, pt, 0.0)
        ppt_m = jnp.where(valid, ppt, 0.0)
        acc_pt_ref[...] += jnp.sum(pt_m.reshape(g, 8, LANE), axis=0)
        acc_ppt_ref[...] += jnp.sum(ppt_m.reshape(g, 8, LANE), axis=0)

    @pl.when(i == pl.num_programs(1) - 1)
    def _finalize():                           # accumulators are already (8,128)
        pt_out_ref[...] = acc_pt_ref[...]
        ppt_out_ref[...] = acc_ppt_ref[...]


def dice_bce_loss(y_pred, y_true, threshold=0.5, smooth=1e-05, num_cores=None):
    assert y_pred.shape == y_true.shape
    flat_p = y_pred.reshape(-1)        # free bitcast; native dtype kept
    flat_t = y_true.reshape(-1)
    n = flat_p.shape[0]

    rows = n // LANE                   # full lanes handled by the kernel
    main = rows * LANE
    tail = n - main                    # < 128 leftover elements (usually 0)

    inse = jnp.float32(0.0)
    lr = jnp.float32(0.0)

    if rows > 0:
        # Lane-dense (rows, 128) view; a pure reshape whenever n % 128 == 0.
        p2 = (flat_p if tail == 0 else flat_p[:main]).reshape(rows, LANE)
        t2 = (flat_t if tail == 0 else flat_t[:main]).reshape(rows, LANE)

        tile_rows = min(MAX_TILE_ROWS, _round_up(rows, 8))
        tiles_total = pl.cdiv(rows, tile_rows)

        ncores = num_cores if num_cores is not None else _detect_num_tensorcores()
        if tiles_total < ncores:
            ncores = 1
        tiles_per_core = pl.cdiv(tiles_total, ncores)

        if ncores * tiles_per_core > tiles_total:
            # Only needed when the core split overshoots; overshoot tiles are
            # fully masked in-kernel and contribute nothing.
            def in_map(c, i):
                return (jnp.minimum(c * tiles_per_core + i, tiles_total - 1), 0)
        else:
            def in_map(c, i):
                return (c * tiles_per_core + i, 0)

        def out_map(c, i):
            return (c, 0)

        kernel = functools.partial(
            _dice_kernel, threshold=float(threshold), valid_rows=rows,
            tile_rows=tile_rows, tiles_per_core=tiles_per_core)

        pt_part, ppt_part = pl.pallas_call(
            kernel,
            out_shape=(jax.ShapeDtypeStruct((ncores * 8, LANE), jnp.float32),
                       jax.ShapeDtypeStruct((ncores * 8, LANE), jnp.float32)),
            grid_spec=pltpu.PrefetchScalarGridSpec(
                num_scalar_prefetch=0,
                grid=(ncores, tiles_per_core),
                in_specs=[pl.BlockSpec((tile_rows, LANE), in_map),
                          pl.BlockSpec((tile_rows, LANE), in_map)],
                out_specs=[pl.BlockSpec((8, LANE), out_map),
                           pl.BlockSpec((8, LANE), out_map)],
                scratch_shapes=[pltpu.VMEM((8, LANE), jnp.float32),
                                pltpu.VMEM((8, LANE), jnp.float32)],
            ),
            compiler_params=pltpu.CompilerParams(
                dimension_semantics=("parallel", "arbitrary"),
                vmem_limit_bytes=VMEM_LIMIT_BYTES),
        )(p2, t2)

        # Combine per-core lane partials (tiny: <= 2*16*128 elements).
        inse = inse + jnp.sum(pt_part)
        lr = lr + jnp.sum(ppt_part)           # == sum(p) + sum(t)

    if tail:
        # <128-element tail handled with plain jnp (negligible traffic),
        # instead of padding/copying the whole input.
        tp = flat_p[main:]
        tt = flat_t[main:]
        pc = tp > threshold
        tc = tt > threshold
        inse = inse + jnp.sum((pc & tc).astype(jnp.float32))
        lr = lr + jnp.sum(pc.astype(jnp.float32)) + jnp.sum(tc.astype(jnp.float32))

    smooth = jnp.float32(smooth)
    return (2.0 * inse + smooth) / (lr + smooth)


def dice_bce_loss_ref(y_pred, y_true, threshold=0.5, smooth=1e-05):
    p = (y_pred > threshold).astype(jnp.float32)
    t = (y_true > threshold).astype(jnp.float32)
    inse = jnp.sum(p * t)
    l = jnp.sum(p)
    r = jnp.sum(t)
    return (2.0 * inse + smooth) / (l + r + smooth)


if __name__ == "__main__":
    key = jax.random.PRNGKey(0)
    k1, k2 = jax.random.split(key)
    # small NCHW shapes: batch=2, channels=4, spatial=16
    y_pred = jax.random.uniform(k1, (2, 4, 16, 16), dtype=jnp.float32)
    y_true = jax.random.uniform(k2, (2, 4, 16, 16), dtype=jnp.float32)

    out = dice_bce_loss(y_pred, y_true)
    out = jax.block_until_ready(out)

    ref = dice_bce_loss_ref(y_pred, y_true)
    assert jnp.allclose(out, ref, rtol=1e-5, atol=1e-6), (out, ref)
    print("KERNEL_OK")
</pallas_src>

<mosaic_0001>
module attributes {stable_mosaic.version = 11 : i64} {
  func.func @_dice_kernel(%arg0: i32, %arg1: i32, %arg2: memref<16x128xf32, #tpu.memory_space<vmem>>, %arg3: memref<16x128xf32, #tpu.memory_space<vmem>>, %arg4: memref<8x128xf32, #tpu.memory_space<vmem>>, %arg5: memref<8x128xf32, #tpu.memory_space<vmem>>, %arg6: memref<8x128xf32, #tpu.memory_space<vmem>>, %arg7: memref<8x128xf32, #tpu.memory_space<vmem>>) attributes {dimension_semantics = [#tpu.dimension_semantics<parallel>, #tpu.dimension_semantics<arbitrary>], iteration_bounds = array<i64: 1, 1>, scalar_prefetch = 0 : i64, scratch_operands = 2 : i64, tpu.core_type = #tpu.core_type<tc>, window_params = [{transform_indices = @transform_0, window_bounds = array<i64: 16, 128>}, {transform_indices = @transform_1, window_bounds = array<i64: 16, 128>}, {transform_indices = @transform_2, window_bounds = array<i64: 8, 128>}, {transform_indices = @transform_3, window_bounds = array<i64: 8, 128>}]} {
    %c0_i32 = arith.constant 0 : i32
    %0 = arith.cmpi eq, %arg1, %c0_i32 : i32
    %1 = arith.extui %0 : i1 to i32
    %c0_i32_0 = arith.constant 0 : i32
    %2 = arith.cmpi ne, %1, %c0_i32_0 : i32
    scf.if %2 {
      %cst_15 = arith.constant 0.000000e+00 : f32
      %32 = vector.broadcast %cst_15 : f32 to vector<8x128xf32>
      %c0_16 = arith.constant 0 : index
      %c0_17 = arith.constant 0 : index
      %33 = vector.load %arg6[%c0_16, %c0_17] : memref<8x128xf32, #tpu.memory_space<vmem>>, vector<8x128xf32>
      tpu.vector_store %arg6[%c0_16, %c0_17], %32 {strides = array<i32>} : memref<8x128xf32, #tpu.memory_space<vmem>>, vector<8x128xf32>,
      %cst_18 = arith.constant 0.000000e+00 : f32
      %34 = vector.broadcast %cst_18 : f32 to vector<8x128xf32>
      %c0_19 = arith.constant 0 : index
      %c0_20 = arith.constant 0 : index
      %35 = vector.load %arg7[%c0_19, %c0_20] : memref<8x128xf32, #tpu.memory_space<vmem>>, vector<8x128xf32>
      tpu.vector_store %arg7[%c0_19, %c0_20], %34 {strides = array<i32>} : memref<8x128xf32, #tpu.memory_space<vmem>>, vector<8x128xf32>,
    } else {
    }
    %c0 = arith.constant 0 : index
    %c0_1 = arith.constant 0 : index
    %3 = vector.load %arg2[%c0, %c0_1] : memref<16x128xf32, #tpu.memory_space<vmem>>, vector<16x128xf32>
    %cst = arith.constant 5.000000e-01 : f32
    %4 = vector.broadcast %cst : f32 to vector<16x128xf32>
    %5 = arith.cmpf ogt, %3, %4 : vector<16x128xf32>
    %c0_2 = arith.constant 0 : index
    %c0_3 = arith.constant 0 : index
    %6 = vector.load %arg3[%c0_2, %c0_3] : memref<16x128xf32, #tpu.memory_space<vmem>>, vector<16x128xf32>
    %cst_4 = arith.constant 5.000000e-01 : f32
    %7 = vector.broadcast %cst_4 : f32 to vector<16x128xf32>
    %8 = arith.cmpf ogt, %6, %7 : vector<16x128xf32>
    %9 = arith.extui %5 : vector<16x128xi1> to vector<16x128xi32>
    %10 = arith.sitofp %9 : vector<16x128xi32> to vector<16x128xf32>
    %11 = arith.extui %8 : vector<16x128xi1> to vector<16x128xi32>
    %12 = arith.sitofp %11 : vector<16x128xi32> to vector<16x128xf32>
    %13 = arith.andi %5, %8 : vector<16x128xi1>
    %cst_5 = arith.constant 1.000000e+00 : f32
    %cst_6 = arith.constant 0.000000e+00 : f32
    %14 = vector.broadcast %cst_5 : f32 to vector<16x128xf32>
    %15 = vector.broadcast %cst_6 : f32 to vector<16x128xf32>
    %16 = arith.select %13, %14, %15 : vector<16x128xi1>, vector<16x128xf32>
    %17 = arith.addf %10, %12 : vector<16x128xf32>
    %c1_i32 = arith.constant 1 : i32
    %18 = arith.muli %arg0, %c1_i32 : i32
    %19 = arith.addi %18, %arg1 : i32
    %c16_i32 = arith.constant 16 : i32
    %20 = arith.muli %19, %c16_i32 : i32
    %c16_i32_7 = arith.constant 16 : i32
    %21 = arith.addi %20, %c16_i32_7 : i32
    %c16_i32_8 = arith.constant 16 : i32
    %22 = arith.cmpi sle, %21, %c16_i32_8 : i32
    %23 = arith.extui %22 : i1 to i32
    %c0_i32_9 = arith.constant 0 : i32
    %24 = arith.cmpi ne, %23, %c0_i32_9 : i32
    scf.if %24 {
      %c0_15 = arith.constant 0 : index
      %c0_16 = arith.constant 0 : index
      %32 = vector.load %arg6[%c0_15, %c0_16] : memref<8x128xf32, #tpu.memory_space<vmem>>, vector<8x128xf32>
      %33 = vector.shape_cast %16 : vector<16x128xf32> to vector<2x8x128xf32>
      %cst_17 = arith.constant dense<0.000000e+00> : vector<8x128xf32>
      %34 = vector.multi_reduction <add>, %33, %cst_17 [0] : vector<2x8x128xf32> to vector<8x128xf32>
      %35 = arith.addf %32, %34 : vector<8x128xf32>
      %c0_18 = arith.constant 0 : index
      %c0_19 = arith.constant 0 : index
      %36 = vector.load %arg6[%c0_18, %c0_19] : memref<8x128xf32, #tpu.memory_space<vmem>>, vector<8x128xf32>
      tpu.vector_store %arg6[%c0_18, %c0_19], %35 {strides = array<i32>} : memref<8x128xf32, #tpu.memory_space<vmem>>, vector<8x128xf32>,
      %c0_20 = arith.constant 0 : index
      %c0_21 = arith.constant 0 : index
      %37 = vector.load %arg7[%c0_20, %c0_21] : memref<8x128xf32, #tpu.memory_space<vmem>>, vector<8x128xf32>
      %38 = vector.shape_cast %17 : vector<16x128xf32> to vector<2x8x128xf32>
      %cst_22 = arith.constant dense<0.000000e+00> : vector<8x128xf32>
      %39 = vector.multi_reduction <add>, %38, %cst_22 [0] : vector<2x8x128xf32> to vector<8x128xf32>
      %40 = arith.addf %37, %39 : vector<8x128xf32>
      %c0_23 = arith.constant 0 : index
      %c0_24 = arith.constant 0 : index
      %41 = vector.load %arg7[%c0_23, %c0_24] : memref<8x128xf32, #tpu.memory_space<vmem>>, vector<8x128xf32>
      tpu.vector_store %arg7[%c0_23, %c0_24], %40 {strides = array<i32>} : memref<8x128xf32, #tpu.memory_space<vmem>>, vector<8x128xf32>,
    } else {
    }
    %c16_i32_10 = arith.constant 16 : i32
    %25 = arith.addi %20, %c16_i32_10 : i32
    %c16_i32_11 = arith.constant 16 : i32
    %26 = arith.cmpi sgt, %25, %c16_i32_11 : i32
    %27 = arith.extui %26 : i1 to i32
    %c0_i32_12 = arith.constant 0 : i32
    %28 = arith.cmpi ne, %27, %c0_i32_12 : i32
    scf.if %28 {
      %32 = tpu.iota {dimensions = array<i32: 0>} : vector<16x128xi32>
      %33 = vector.broadcast %20 : i32 to vector<16x128xi32>
      %34 = arith.addi %33, %32 : vector<16x128xi32>
      %c16_i32_15 = arith.constant 16 : i32
      %35 = vector.broadcast %c16_i32_15 : i32 to vector<16x128xi32>
      %36 = arith.cmpi slt, %34, %35 : vector<16x128xi32>
      %cst_16 = arith.constant 0.000000e+00 : f32
      %37 = vector.broadcast %cst_16 : f32 to vector<16x128xf32>
      %38 = arith.select %36, %16, %37 : vector<16x128xi1>, vector<16x128xf32>
      %cst_17 = arith.constant 0.000000e+00 : f32
      %39 = vector.broadcast %cst_17 : f32 to vector<16x128xf32>
      %40 = arith.select %36, %17, %39 : vector<16x128xi1>, vector<16x128xf32>
      %c0_18 = arith.constant 0 : index
      %c0_19 = arith.constant 0 : index
      %41 = vector.load %arg6[%c0_18, %c0_19] : memref<8x128xf32, #tpu.memory_space<vmem>>, vector<8x128xf32>
      %42 = vector.shape_cast %38 : vector<16x128xf32> to vector<2x8x128xf32>
      %cst_20 = arith.constant dense<0.000000e+00> : vector<8x128xf32>
      %43 = vector.multi_reduction <add>, %42, %cst_20 [0] : vector<2x8x128xf32> to vector<8x128xf32>
      %44 = arith.addf %41, %43 : vector<8x128xf32>
      %c0_21 = arith.constant 0 : index
      %c0_22 = arith.constant 0 : index
      %45 = vector.load %arg6[%c0_21, %c0_22] : memref<8x128xf32, #tpu.memory_space<vmem>>, vector<8x128xf32>
      tpu.vector_store %arg6[%c0_21, %c0_22], %44 {strides = array<i32>} : memref<8x128xf32, #tpu.memory_space<vmem>>, vector<8x128xf32>,
      %c0_23 = arith.constant 0 : index
      %c0_24 = arith.constant 0 : index
      %46 = vector.load %arg7[%c0_23, %c0_24] : memref<8x128xf32, #tpu.memory_space<vmem>>, vector<8x128xf32>
      %47 = vector.shape_cast %40 : vector<16x128xf32> to vector<2x8x128xf32>
      %cst_25 = arith.constant dense<0.000000e+00> : vector<8x128xf32>
      %48 = vector.multi_reduction <add>, %47, %cst_25 [0] : vector<2x8x128xf32> to vector<8x128xf32>
      %49 = arith.addf %46, %48 : vector<8x128xf32>
      %c0_26 = arith.constant 0 : index
      %c0_27 = arith.constant 0 : index
      %50 = vector.load %arg7[%c0_26, %c0_27] : memref<8x128xf32, #tpu.memory_space<vmem>>, vector<8x128xf32>
      tpu.vector_store %arg7[%c0_26, %c0_27], %49 {strides = array<i32>} : memref<8x128xf32, #tpu.memory_space<vmem>>, vector<8x128xf32>,
    } else {
    }
    %c0_i32_13 = arith.constant 0 : i32
    %29 = arith.cmpi eq, %arg1, %c0_i32_13 : i32
    %30 = arith.extui %29 : i1 to i32
    %c0_i32_14 = arith.constant 0 : i32
    %31 = arith.cmpi ne, %30, %c0_i32_14 : i32
    scf.if %31 {
      %c0_15 = arith.constant 0 : index
      %c0_16 = arith.constant 0 : index
      %32 = vector.load %arg6[%c0_15, %c0_16] : memref<8x128xf32, #tpu.memory_space<vmem>>, vector<8x128xf32>
      %c0_17 = arith.constant 0 : index
      %c0_18 = arith.constant 0 : index
      %33 = vector.load %arg4[%c0_17, %c0_18] : memref<8x128xf32, #tpu.memory_space<vmem>>, vector<8x128xf32>
      tpu.vector_store %arg4[%c0_17, %c0_18], %32 {strides = array<i32>} : memref<8x128xf32, #tpu.memory_space<vmem>>, vector<8x128xf32>,
      %c0_19 = arith.constant 0 : index
      %c0_20 = arith.constant 0 : index
      %34 = vector.load %arg7[%c0_19, %c0_20] : memref<8x128xf32, #tpu.memory_space<vmem>>, vector<8x128xf32>
      %c0_21 = arith.constant 0 : index
      %c0_22 = arith.constant 0 : index
      %35 = vector.load %arg5[%c0_21, %c0_22] : memref<8x128xf32, #tpu.memory_space<vmem>>, vector<8x128xf32>
      tpu.vector_store %arg5[%c0_21, %c0_22], %34 {strides = array<i32>} : memref<8x128xf32, #tpu.memory_space<vmem>>, vector<8x128xf32>,
    } else {
    }
    return
  }
  func.func @transform_0(%arg0: i32, %arg1: i32) -> (i32, i32) {
    %c1_i32 = arith.constant 1 : i32
    %0 = arith.muli %arg0, %c1_i32 : i32
    %1 = arith.addi %0, %arg1 : i32
    %c0_i32 = arith.constant 0 : i32
    %c0_i32_0 = arith.constant 0 : i32
    return %1, %c0_i32 : i32, i32
  }
  func.func @transform_1(%arg0: i32, %arg1: i32) -> (i32, i32) {
    %c1_i32 = arith.constant 1 : i32
    %0 = arith.muli %arg0, %c1_i32 : i32
    %1 = arith.addi %0, %arg1 : i32
    %c0_i32 = arith.constant 0 : i32
    %c0_i32_0 = arith.constant 0 : i32
    return %1, %c0_i32 : i32, i32
  }
  func.func @transform_2(%arg0: i32, %arg1: i32) -> (i32, i32) {
    %c0_i32 = arith.constant 0 : i32
    %c0_i32_0 = arith.constant 0 : i32
    return %arg0, %c0_i32 : i32, i32
  }
  func.func @transform_3(%arg0: i32, %arg1: i32) -> (i32, i32) {
    %c0_i32 = arith.constant 0 : i32
    %c0_i32_0 = arith.constant 0 : i32
    return %arg0, %c0_i32 : i32, i32
  }
}

</mosaic_0001>

<llo_original>
// kernel: tpu_custom_call.1
$region0: #{tpu_custom_call.1}
  #allocation0 [shape = 'u32[]', space=smem, size = 0x4, offset = 0x4, fixed_abs, tag = 'smem constant byte address 0x4 - core index']
  #allocation1 [shape = 'u32[144,128]{1,0:T(1,128)}', space=vmem, size = 0x12000, scoped, tag = 'internal scratch']
  #allocation2 [shape = 'f32[8,128]{1,0:T(8,128)}', space=vmem, size = 0x1000, scoped, tag = 'scratch operand']
  #allocation3 [shape = 'f32[8,128]{1,0:T(8,128)}', space=vmem, size = 0x1000, scoped, tag = 'scratch operand']
  %s0 = inlined_call_operand.hbm [shape: f32[16,128], index: 0, kind: input, shape index: {}]
  %s1 = inlined_call_operand.hbm [shape: f32[16,128], index: 1, kind: input, shape index: {}]
  %s2 = inlined_call_operand.hbm [shape: f32[8,128], index: 2, kind: output, shape index: {0}]
  %s3 = inlined_call_operand.hbm [shape: f32[8,128], index: 3, kind: output, shape index: {1}]
  %4 = xla_tuple %s2, %s3
  %s5 = sld [smem:[#allocation0]]
  $region50: #{tpu_custom_call.1} parent=0
    _
  %s7 = ssub.s32 1, %s5
  %s8 = scalar_select 0, %s7, %s5
  $region1: #{tpu_custom_call.1} parent=0
    #allocation4 [shape = 'u8[8192]{0}', space=vmem, size = 0x2000, scoped, tag = 'input window, operand 0, single buffered']
    #allocation5 [shape = 's32[1]{0}', space=sflag, size = 0x4, scoped, tag = 'scoped memory for tpu_custom_call.1']
    #allocation6 [shape = 's32[1]{0}', space=sflag, size = 0x4, scoped, tag = 'scoped memory for tpu_custom_call.1']
    #allocation7 [shape = 'u8[8192]{0}', space=vmem, size = 0x2000, scoped, tag = 'input window, operand 1, single buffered']
    #allocation8 [shape = 's32[1]{0}', space=sflag, size = 0x4, scoped, tag = 'scoped memory for tpu_custom_call.1']
    #allocation9 [shape = 'u8[4096]{0}', space=vmem, size = 0x1000, scoped, tag = 'output window, operand 0, single buffered']
    #allocation10 [shape = 'u8[4096]{0}', space=vmem, size = 0x1000, scoped, tag = 'output window, operand 1, single buffered']
    #allocation11 [shape = 's32[1]{0}', space=sflag, size = 0x4, scoped, tag = 'scoped memory for tpu_custom_call.1']
    %9 = vsyncpa [#allocation5], 0
    %10 = vsyncpa [#allocation8], 0
    %11 = vsyncpa [#allocation6], 0
    %12 = vsyncpa [#allocation11], 0
    // Predicated region
    $region2: #{tpu_custom_call.1} parent=1 // pred_check
      _
    $region3: #{tpu_custom_call.1} parent=1 // pred_check_branch
      %14 = sbr.rel (0) target = $region5
    $region4: #{tpu_custom_call.1} parent=1 // pred_region
      %s15 = sadd.s32 0, 0
      %s16 = smul.u32 2, %s15
      %s18 = ssub.s32 256, 256
      %19 = vsyncadd [#allocation5], %s18
      %s20 = smul.addr %s16, 128
      %s21 = scalar_lea.hbm %s0, %s20
      %s22 = sshll.u32 [#allocation4], 4
      %s23 = int_to_ptr.vmem [resolvable:$true] %s22
      %28 = dma.hbm_to_vmem [thread:$0]  %s21, 256, %s23, [#allocation5], 128, 128, 8
    $region5: #{tpu_custom_call.1} parent=1 // pred_fallthru
      _
    // Predicated region
    $region6: #{tpu_custom_call.1} parent=1 // pred_check
      _
    $region7: #{tpu_custom_call.1} parent=1 // pred_check_branch
      %30 = sbr.rel (0) target = $region9
    $region8: #{tpu_custom_call.1} parent=1 // pred_region
      %s31 = sadd.s32 0, 0
      %s32 = smul.u32 2, %s31
      %s34 = ssub.s32 256, 256
      %35 = vsyncadd [#allocation8], %s34
      %s36 = smul.addr %s32, 128
      %s37 = scalar_lea.hbm %s1, %s36
      %s38 = sshll.u32 [#allocation7], 4
      %s39 = int_to_ptr.vmem [resolvable:$true] %s38
      %44 = dma.hbm_to_vmem [thread:$0]  %s37, 256, %s39, [#allocation8], 128, 128, 8
    $region9: #{tpu_custom_call.1} parent=1 // pred_fallthru
      _
    // Predicated region
    $region10: #{tpu_custom_call.1} parent=1 // pred_check
      _
    $region11: #{tpu_custom_call.1} parent=1 // pred_check_branch
      %46 = sbr.rel (0) target = $region13
    $region12: #{tpu_custom_call.1} parent=1 // pred_region
      %47 = dma.done [#allocation5], 256
    $region13: #{tpu_custom_call.1} parent=1 // pred_fallthru
      _
    // Predicated region
    $region14: #{tpu_custom_call.1} parent=1 // pred_check
      _
    $region15: #{tpu_custom_call.1} parent=1 // pred_check_branch
      %49 = sbr.rel (0) target = $region17
    $region16: #{tpu_custom_call.1} parent=1 // pred_region
      %50 = dma.done [#allocation8], 256
    $region17: #{tpu_custom_call.1} parent=1 // pred_fallthru
      _
    %s51 = sadd.s32 0, 0
    %s52 = smul.u32 2, %s51
    %s53 = sadd.s32 0, 0
    %s54 = smul.u32 2, %s53
    %p55 = scmp.eq.s32.totalorder 0, 0
    // Predicated region
    $region18: #{tpu_custom_call.1} parent=1 // pred_check
      %p56 = pneg %p55
    $region19: #{tpu_custom_call.1} parent=1 // pred_check_branch
      %58 = sbr.rel (%p56) target = $region21
    $region20: #{tpu_custom_call.1} parent=1 // pred_region
      %59 = vst [vmem:[#allocation2] sm:$0xff] 0.0
      %60 = vst [vmem:[#allocation3] sm:$0xff] 0.0
    $region21: #{tpu_custom_call.1} parent=1 // pred_fallthru
      _
    %v61 = vld [vmem:[#allocation4] sm:$0xff]
    %v62 = vld [vmem:[#allocation4 + $0x8] sm:$0xff]
    %vm63 = vcmp.gt.f32.partialorder %v61, 0.5
    %vm64 = vcmp.gt.f32.partialorder %v62, 0.5
    %v65 = vld [vmem:[#allocation7] sm:$0xff]
    %v66 = vld [vmem:[#allocation7 + $0x8] sm:$0xff]
    %vm67 = vcmp.gt.f32.partialorder %v65, 0.5
    %vm68 = vcmp.gt.f32.partialorder %v66, 0.5
    %v69 = vsel %vm63, 1, 0
    %v70 = vsel %vm64, 1, 0
    %v71 = vcvt.s32.f32 %v69
    %v72 = vcvt.s32.f32 %v70
    %v73 = vsel %vm67, 1, 0
    %v74 = vsel %vm68, 1, 0
    %v75 = vcvt.s32.f32 %v73
    %v76 = vcvt.s32.f32 %v74
    %vm77 = vmand %vm63, %vm67
    %vm78 = vmand %vm64, %vm68
    %v79 = vsel %vm77, 1.0, 0.0
    %v80 = vsel %vm78, 1.0, 0.0
    %v81 = vadd.f32 %v71, %v75
    %v82 = vadd.f32 %v72, %v76
    %s83 = sadd.s32 0, 0
    %s84 = smul.u32 %s83, 16
    %s85 = sadd.s32 %s84, 16
    %p86 = scmp.le.s32.totalorder %s85, 16
    // Predicated region
    $region22: #{tpu_custom_call.1} parent=1 // pred_check
      %p87 = pneg %p86
    $region23: #{tpu_custom_call.1} parent=1 // pred_check_branch
      %89 = sbr.rel (%p87) target = $region25
    $region24: #{tpu_custom_call.1} parent=1 // pred_region
      %v90 = vld [vmem:[#allocation2] sm:$0xff]
      %v91 = vadd.f32 %v79, %v80
      %v92 = vadd.f32 %v90, %v91
      %93 = vst [vmem:[#allocation2] sm:$0xff] %v92
      %v94 = vld [vmem:[#allocation3] sm:$0xff]
      %v95 = vadd.f32 %v81, %v82
      %v96 = vadd.f32 %v94, %v95
      %97 = vst [vmem:[#allocation3] sm:$0xff] %v96
    $region25: #{tpu_custom_call.1} parent=1 // pred_fallthru
      _
    %p98 = scmp.gt.s32.totalorder %s85, 16
    // Predicated region
    $region26: #{tpu_custom_call.1} parent=1 // pred_check
      %p99 = pneg %p98
    $region27: #{tpu_custom_call.1} parent=1 // pred_check_branch
      %101 = sbr.rel (%p99) target = $region29
    $region28: #{tpu_custom_call.1} parent=1 // pred_region
      %v102 = vlaneseq
      %v103 = vshrl.u32 %v102, 7
      %v104 = vadd.s32 %v103, 8
      %v105 = vstv %s84
      %v106 = vadd.s32 %v105, %v103
      %v107 = vadd.s32 %v105, %v104
      %vm108 = vcmp.lt.s32.totalorder %v106, 16
      %vm109 = vcmp.lt.s32.totalorder %v107, 16
      %v110 = vsel %vm108, %v79, 0.0
      %v111 = vsel %vm109, %v80, 0.0
      %v112 = vsel %vm108, %v81, 0.0
      %v113 = vsel %vm109, %v82, 0.0
      %v114 = vld [vmem:[#allocation2] sm:$0xff]
      %v115 = vadd.f32 %v110, %v111
      %v116 = vadd.f32 %v114, %v115
      %117 = vst [vmem:[#allocation2] sm:$0xff] %v116
      %v118 = vld [vmem:[#allocation3] sm:$0xff]
      %v119 = vadd.f32 %v112, %v113
      %v120 = vadd.f32 %v118, %v119
      %121 = vst [vmem:[#allocation3] sm:$0xff] %v120
    $region29: #{tpu_custom_call.1} parent=1 // pred_fallthru
      _
    // Predicated region
    $region30: #{tpu_custom_call.1} parent=1 // pred_check
      %p122 = pneg %p55
    $region31: #{tpu_custom_call.1} parent=1 // pred_check_branch
      %124 = sbr.rel (%p122) target = $region33
    $region32: #{tpu_custom_call.1} parent=1 // pred_region
      %v125 = vld [vmem:[#allocation2] sm:$0xff]
      %126 = vst [vmem:[#allocation9] sm:$0xff] %v125
      %v127 = vld [vmem:[#allocation3] sm:$0xff]
      %128 = vst [vmem:[#allocation10] sm:$0xff] %v127
    $region33: #{tpu_custom_call.1} parent=1 // pred_fallthru
      _
    // Predicated region
    $region34: #{tpu_custom_call.1} parent=1 // pred_check
      _
    $region35: #{tpu_custom_call.1} parent=1 // pred_check_branch
      %130 = sbr.rel (0) target = $region37
    $region36: #{tpu_custom_call.1} parent=1 // pred_region
      %s132 = ssub.s32 128, 128
      %133 = vsyncadd [#allocation6], %s132
      %s135 = sshll.u32 [#allocation9], 4
      %s136 = int_to_ptr.vmem [resolvable:$true] %s135
      %138 = dma.vmem_to_hbm [thread:$0]  %s136, 128, %s2, [#allocation6]
    $region37: #{tpu_custom_call.1} parent=1 // pred_fallthru
      _
    // Predicated region
    $region38: #{tpu_custom_call.1} parent=1 // pred_check
      _
    $region39: #{tpu_custom_call.1} parent=1 // pred_check_branch
      %140 = sbr.rel (0) target = $region41
    $region40: #{tpu_custom_call.1} parent=1 // pred_region
      %s142 = ssub.s32 128, 128
      %143 = vsyncadd [#allocation11], %s142
      %s145 = sshll.u32 [#allocation10], 4
      %s146 = int_to_ptr.vmem [resolvable:$true] %s145
      %148 = dma.vmem_to_hbm [thread:$0]  %s146, 128, %s3, [#allocation11]
    $region41: #{tpu_custom_call.1} parent=1 // pred_fallthru
      _
    // Predicated region
    $region42: #{tpu_custom_call.1} parent=1 // pred_check
      _
    $region43: #{tpu_custom_call.1} parent=1 // pred_check_branch
      %150 = sbr.rel (0) target = $region45
    $region44: #{tpu_custom_call.1} parent=1 // pred_region
      %151 = dma.done [#allocation6], 128
    $region45: #{tpu_custom_call.1} parent=1 // pred_fallthru
      _
    // Predicated region
    $region46: #{tpu_custom_call.1} parent=1 // pred_check
      _
    $region47: #{tpu_custom_call.1} parent=1 // pred_check_branch
      %153 = sbr.rel (0) target = $region49
    $region48: #{tpu_custom_call.1} parent=1 // pred_region
      %154 = dma.done [#allocation11], 128
    $region49: #{tpu_custom_call.1} parent=1 // pred_fallthru
      _
    %155 = vsyncpa [#allocation5], 1
    %156 = vsyncpa [#allocation8], 1
    %157 = vsyncpa [#allocation6], 1
    %158 = vsyncpa [#allocation11], 1

</llo_original>
